<compile_context>
chip_gen: v5e
topology: v5e:2x2
jax: 0.10.0
libtpu: 0.0.40
codegen_flags: <defaults>
</compile_context>

<pallas_src>
import math

import jax
import jax.numpy as jnp
from jax.experimental import pallas as pl
from jax.experimental.pallas import tpu as pltpu

_EPS = 1e-8
_LANES = 128
_SUBLANES = 8


def _cosine_sim_kernel(x1_ref, x2_ref, o_ref):
    # x1_ref / x2_ref: (tile_b, C, tile_rows, 128); o_ref: (tile_b, 1, tile_rows, 128)
    x1 = x1_ref[...].astype(jnp.float32)
    x2 = x2_ref[...].astype(jnp.float32)
    dot = jnp.sum(x1 * x2, axis=1, keepdims=True)          # VALU adds across vregs
    # Per-operand sqrt before the product (avoids f32 overflow of
    # ||x1||^2 * ||x2||^2 for extreme magnitudes) and matches the documented
    # PyTorch formula dot / max(||x1|| * ||x2||, eps).  sqrt / divide ride the
    # EUP slot -> free in this bandwidth-bound kernel.
    n1 = jnp.sqrt(jnp.sum(x1 * x1, axis=1, keepdims=True))
    n2 = jnp.sqrt(jnp.sum(x2 * x2, axis=1, keepdims=True))
    denom = jnp.maximum(n1 * n2, _EPS)
    o_ref[...] = (dot / denom).astype(o_ref.dtype)


def _vmem_budget_bytes():
    # Generation-conditional scoped-VMEM request: half of physical VMEM
    # (v5e/v6e: 128 MiB -> 64 MiB, v7x: 64 MiB -> 32 MiB).
    try:
        cap = int(pltpu.get_tpu_info().vmem_capacity_bytes)
    except Exception:
        cap = 64 * 1024 * 1024  # conservative (v7x-sized) fallback
    return max(16 * 1024 * 1024, cap // 2)


def cosine_similarity_model(input1, input2):
    """Equivalent of CosineSimilarityModel.forward: cosine sim along dim=1."""
    assert input1.shape == input2.shape
    assert input1.ndim >= 2
    shape = input1.shape
    B, C = int(shape[0]), int(shape[1])
    spatial = tuple(int(d) for d in shape[2:])
    HW = max(1, math.prod(spatial))

    out_dtype = jnp.result_type(input1.dtype, input2.dtype)
    itemsize = jnp.dtype(input1.dtype).itemsize

    # --- wrapper-side layout: (B, C, *spatial) -> (B, C, rows, 128) ----------
    HW_pad = pl.cdiv(HW, _LANES) * _LANES
    rows = HW_pad // _LANES
    x1 = input1.reshape(B, C, HW)
    x2 = input2.reshape(B, C, HW)
    if HW_pad != HW:
        pad = ((0, 0), (0, 0), (0, HW_pad - HW))
        x1 = jnp.pad(x1, pad)
        x2 = jnp.pad(x2, pad)
    x1 = x1.reshape(B, C, rows, _LANES)
    x2 = x2.reshape(B, C, rows, _LANES)

    # --- tile sizing against the (dense) VMEM footprint ----------------------
    vmem_limit = _vmem_budget_bytes()
    # 2 inputs x 2 pipeline buffers + 2 output buffers (tile_in / C each)
    # ~= (4 + 2/C) * tile_in; dividing by 6 leaves >=25% headroom for scratch.
    tile_in_budget = vmem_limit // 6
    bytes_per_row_per_input = C * _LANES * itemsize
    tile_rows_budget = max(
        _SUBLANES,
        (tile_in_budget // bytes_per_row_per_input) // _SUBLANES * _SUBLANES,
    )
    if rows <= tile_rows_budget:
        tile_rows = rows              # full extent -> always a legal block shape
    else:
        tile_rows = tile_rows_budget  # multiple of 8; edge block masked by Pallas

    # Fold batch into the tile when the whole spatial extent is one small slab,
    # to amortize per-grid-step overhead; keep >=2 batch programs so both v7x
    # TensorCores get work.
    tile_b = 1
    if tile_rows == rows and B > 2:
        per_batch_in_bytes = rows * bytes_per_row_per_input
        tile_b = max(1, min(B // 2, tile_in_budget // max(per_batch_in_bytes, 1)))

    # If everything collapsed into a single program, split the row axis so the
    # grid still exposes >=2 parallel programs (megacore sharding on v7x).
    if B == 1 and tile_b == 1 and tile_rows == rows and rows > _SUBLANES:
        half = pl.cdiv(rows, 2)
        tile_rows = pl.cdiv(half, _SUBLANES) * _SUBLANES

    grid = (pl.cdiv(B, tile_b), pl.cdiv(rows, tile_rows))

    cost = pl.CostEstimate(
        flops=6 * B * C * HW,
        transcendentals=3 * B * HW,  # 2 sqrt + 1 reciprocal per output element
        bytes_accessed=2 * B * C * HW * itemsize
        + B * HW * jnp.dtype(out_dtype).itemsize,
    )

    out = pl.pallas_call(
        _cosine_sim_kernel,
        out_shape=jax.ShapeDtypeStruct((B, 1, rows, _LANES), out_dtype),
        grid_spec=pltpu.PrefetchScalarGridSpec(
            num_scalar_prefetch=0,
            grid=grid,
            in_specs=[
                pl.BlockSpec((tile_b, C, tile_rows, _LANES),
                             lambda b, j: (b, 0, j, 0)),
                pl.BlockSpec((tile_b, C, tile_rows, _LANES),
                             lambda b, j: (b, 0, j, 0)),
            ],
            out_specs=pl.BlockSpec((tile_b, 1, tile_rows, _LANES),
                                   lambda b, j: (b, 0, j, 0)),
        ),
        compiler_params=pltpu.CompilerParams(
            dimension_semantics=("parallel", "parallel"),
            vmem_limit_bytes=vmem_limit,
        ),
        cost_estimate=cost,
    )(x1, x2)

    out = out.reshape(B, HW_pad)[:, :HW]
    return out.reshape((B,) + spatial)


if __name__ == "__main__":
    key = jax.random.PRNGKey(0)
    k1, k2 = jax.random.split(key)
    # NCHW inputs, matching a typical use of F.cosine_similarity(dim=1).
    x1 = jax.random.normal(k1, (2, 4, 16, 16), dtype=jnp.float32)
    x2 = jax.random.normal(k2, (2, 4, 16, 16), dtype=jnp.float32)

    out = cosine_similarity_model(x1, x2)
    out = jax.block_until_ready(out)

    # Reference check in plain JAX (same formula as F.cosine_similarity).
    dot = jnp.sum(x1 * x2, axis=1)
    denom = jnp.maximum(
        jnp.linalg.norm(x1, axis=1) * jnp.linalg.norm(x2, axis=1), _EPS
    )
    ref = dot / denom
    assert out.shape == (2, 16, 16)
    assert jnp.allclose(out, ref, atol=1e-5, rtol=1e-5)

    print("KERNEL_OK")
</pallas_src>

<mosaic_0001>
module attributes {stable_mosaic.version = 11 : i64} {
  func.func @_cosine_sim_kernel(%arg0: i32, %arg1: i32, %arg2: memref<1x4x2x128xf32, #tpu.memory_space<vmem>>, %arg3: memref<1x4x2x128xf32, #tpu.memory_space<vmem>>, %arg4: memref<1x1x2x128xf32, #tpu.memory_space<vmem>>) attributes {dimension_semantics = [#tpu.dimension_semantics<parallel>, #tpu.dimension_semantics<parallel>], iteration_bounds = array<i64: 2, 1>, scalar_prefetch = 0 : i64, scratch_operands = 0 : i64, tpu.core_type = #tpu.core_type<tc>, window_params = [{transform_indices = @transform_0, window_bounds = array<i64: 1, 4, 2, 128>}, {transform_indices = @transform_1, window_bounds = array<i64: 1, 4, 2, 128>}, {transform_indices = @transform_2, window_bounds = array<i64: 1, 1, 2, 128>}]} {
    %c0 = arith.constant 0 : index
    %c0_0 = arith.constant 0 : index
    %c0_1 = arith.constant 0 : index
    %c0_2 = arith.constant 0 : index
    %0 = vector.load %arg2[%c0, %c0_0, %c0_1, %c0_2] : memref<1x4x2x128xf32, #tpu.memory_space<vmem>>, vector<1x4x2x128xf32>
    %c0_3 = arith.constant 0 : index
    %c0_4 = arith.constant 0 : index
    %c0_5 = arith.constant 0 : index
    %c0_6 = arith.constant 0 : index
    %1 = vector.load %arg3[%c0_3, %c0_4, %c0_5, %c0_6] : memref<1x4x2x128xf32, #tpu.memory_space<vmem>>, vector<1x4x2x128xf32>
    %2 = arith.mulf %0, %1 : vector<1x4x2x128xf32>
    %cst = arith.constant dense<0.000000e+00> : vector<1x2x128xf32>
    %3 = vector.multi_reduction <add>, %2, %cst [1] : vector<1x4x2x128xf32> to vector<1x2x128xf32>
    %4 = vector.shape_cast %3 : vector<1x2x128xf32> to vector<1x1x2x128xf32>
    %5 = arith.mulf %0, %0 : vector<1x4x2x128xf32>
    %cst_7 = arith.constant dense<0.000000e+00> : vector<1x2x128xf32>
    %6 = vector.multi_reduction <add>, %5, %cst_7 [1] : vector<1x4x2x128xf32> to vector<1x2x128xf32>
    %7 = vector.shape_cast %6 : vector<1x2x128xf32> to vector<1x1x2x128xf32>
    %8 = math.sqrt %7 : vector<1x1x2x128xf32>
    %9 = arith.mulf %1, %1 : vector<1x4x2x128xf32>
    %cst_8 = arith.constant dense<0.000000e+00> : vector<1x2x128xf32>
    %10 = vector.multi_reduction <add>, %9, %cst_8 [1] : vector<1x4x2x128xf32> to vector<1x2x128xf32>
    %11 = vector.shape_cast %10 : vector<1x2x128xf32> to vector<1x1x2x128xf32>
    %12 = math.sqrt %11 : vector<1x1x2x128xf32>
    %13 = arith.mulf %8, %12 : vector<1x1x2x128xf32>
    %cst_9 = arith.constant 9.99999993E-9 : f32
    %14 = vector.broadcast %cst_9 : f32 to vector<1x1x2x128xf32>
    %15 = arith.maximumf %13, %14 : vector<1x1x2x128xf32>
    %16 = arith.divf %4, %15 : vector<1x1x2x128xf32>
    %c0_10 = arith.constant 0 : index
    %c0_11 = arith.constant 0 : index
    %c0_12 = arith.constant 0 : index
    %c0_13 = arith.constant 0 : index
    %17 = vector.load %arg4[%c0_10, %c0_11, %c0_12, %c0_13] : memref<1x1x2x128xf32, #tpu.memory_space<vmem>>, vector<1x1x2x128xf32>
    tpu.vector_store %arg4[%c0_10, %c0_11, %c0_12, %c0_13], %16 {strides = array<i32>} : memref<1x1x2x128xf32, #tpu.memory_space<vmem>>, vector<1x1x2x128xf32>,
    return
  }
  func.func @transform_0(%arg0: i32, %arg1: i32) -> (i32, i32, i32, i32) {
    %c0_i32 = arith.constant 0 : i32
    %c0_i32_0 = arith.constant 0 : i32
    %c0_i32_1 = arith.constant 0 : i32
    return %arg0, %c0_i32, %arg1, %c0_i32_0 : i32, i32, i32, i32
  }
  func.func @transform_1(%arg0: i32, %arg1: i32) -> (i32, i32, i32, i32) {
    %c0_i32 = arith.constant 0 : i32
    %c0_i32_0 = arith.constant 0 : i32
    %c0_i32_1 = arith.constant 0 : i32
    return %arg0, %c0_i32, %arg1, %c0_i32_0 : i32, i32, i32, i32
  }
  func.func @transform_2(%arg0: i32, %arg1: i32) -> (i32, i32, i32, i32) {
    %c0_i32 = arith.constant 0 : i32
    %c0_i32_0 = arith.constant 0 : i32
    %c0_i32_1 = arith.constant 0 : i32
    return %arg0, %c0_i32, %arg1, %c0_i32_0 : i32, i32, i32, i32
  }
}

</mosaic_0001>

<llo_original>
// kernel: tpu_custom_call.1
$region0: #{tpu_custom_call.1}
  #allocation0 [shape = 'u32[]', space=smem, size = 0x4, offset = 0x4, fixed_abs, tag = 'smem constant byte address 0x4 - core index']
  #allocation1 [shape = 'u32[72,128]{1,0:T(1,128)}', space=vmem, size = 0x9000, scoped, tag = 'internal scratch']
  %s0 = inlined_call_operand.hbm [shape: f32[2,4,2,128], index: 0, kind: input, shape index: {}]
  %s1 = inlined_call_operand.hbm [shape: f32[2,4,2,128], index: 1, kind: input, shape index: {}]
  %s2 = inlined_call_operand.hbm [shape: f32[2,1,2,128], index: 2, kind: output, shape index: {}]
  %s3 = sld [smem:[#allocation0]]
  $region49: #{tpu_custom_call.1} parent=0
    _
  %s5 = ssub.s32 1, %s3
  %s6 = scalar_select 0, %s5, %s3
  $region1: #{tpu_custom_call.1} parent=0
    #allocation2 [shape = 'u8[8192]{0}', space=vmem, size = 0x2000, scoped, tag = 'input window, operand 0']
    #allocation3 [shape = 's32[2]{0}', space=sflag, size = 0x8, scoped, tag = 'scoped memory for tpu_custom_call.1']
    #allocation4 [shape = 's32[2]{0}', space=sflag, size = 0x8, scoped, tag = 'scoped memory for tpu_custom_call.1']
    #allocation5 [shape = 'u8[8192]{0}', space=vmem, size = 0x2000, scoped, tag = 'input window, operand 1']
    #allocation6 [shape = 's32[2]{0}', space=sflag, size = 0x8, scoped, tag = 'scoped memory for tpu_custom_call.1']
    #allocation7 [shape = 'u8[2048]{0}', space=vmem, size = 0x800, scoped, tag = 'output window, operand 0']
    %7 = vsyncpa [#allocation3], 0
    %s8 = scalar_lea.sflag [#allocation3], 1
    %9 = vsyncpa %s8, 0
    %10 = vsyncpa [#allocation6], 0
    %s11 = scalar_lea.sflag [#allocation6], 1
    %12 = vsyncpa %s11, 0
    %13 = vsyncpa [#allocation4], 0
    %s14 = scalar_lea.sflag [#allocation4], 1
    %15 = vsyncpa %s14, 0
    loop: start=0, step=1, limit=4
    $region2: #{tpu_custom_call.1} parent=1 // loop_pre_header
      _
    $region3: #{tpu_custom_call.1} parent=1 // loop_header
      %s17 = sphi 0, %s21
      %p18 = scmp.ge.s32.totalorder %s17, 4
      %s24 = sphi 0, %s36
      %s25 = sphi 0, %s32
      %s26 = sphi 0, %s24
      %s27 = sphi 0, %s25
      %s28 = sphi 0, %s26
      %s29 = sphi 0, %s27
      %s41 = sphi 0, %s43
      %s44 = sphi 0, %s41
      %s45 = sphi 0, %s44
      %s61 = sphi 0, %s45
      %s69 = sphi 0, %s71
      %s72 = sphi 0, %s69
      %s73 = sphi 0, %s72
      %s89 = sphi 0, %s73
      %s97 = sphi 0, %s99
      %s100 = sphi 0, %s97
      %s101 = sphi 0, %s100
      %s117 = sphi 0, %s101
    $region4: #{tpu_custom_call.1} parent=1 // loop_header_branch
      %20 = sbr.rel (%p18) target = $region8
    $region5: #{tpu_custom_call.1} parent=1 // loop_body
      %s22 = ssub.s32 %s17, 1
      %s23 = ssub.s32 %s17, 2
      %s30 = sadd.s32 1, %s25
      %p31 = scmp.ge.s32.totalorder %s30, 1
      %s32 = scalar_select %p31, 0, %s30
      %s33 = sadd.s32 1, %s24
      %s34 = scalar_select %p31, %s33, %s24
      %p35 = scmp.ge.s32.totalorder %s34, 2
      %s36 = scalar_select %p35, 0, %s34
      %s37 = ssub.s32 %s24, %s36
      %s38 = ssub.s32 %s25, %s32
      %s39 = sor.u32 %s37, %s38
      %p40 = scmp.eq.s32.totalorder %s39, 0
      %s42 = sadd.s32 %s41, 1
      %s43 = scalar_select %p40, %s41, %s42
      %p46 = pneg %p40
      %p47 = scmp.eq.s32.totalorder %s17, 1
      %p48 = por %p46, %p47
      %p49 = scmp.ne.s32.totalorder %s41, %s44
      %p50 = scmp.eq.s32.totalorder %s17, 0
      %p51 = por %p49, %p50
      %p52 = scmp.ne.s32.totalorder %s41, %s44
      %p53 = scmp.eq.s32.totalorder %s22, 1
      %p54 = por %p52, %p53
      %p55 = scmp.ne.s32.totalorder %s44, %s45
      %p56 = scmp.eq.s32.totalorder %s22, 0
      %p57 = por %p55, %p56
      %p58 = scmp.ne.s32.totalorder %s44, %s45
      %p59 = scmp.eq.s32.totalorder %s23, 1
      %p60 = por %p58, %p59
      %p62 = scmp.ne.s32.totalorder %s45, %s61
      %p63 = scmp.eq.s32.totalorder %s23, 0
      %p64 = por %p62, %p63
      %s65 = ssub.s32 %s24, %s36
      %s66 = ssub.s32 %s25, %s32
      %s67 = sor.u32 %s65, %s66
      %p68 = scmp.eq.s32.totalorder %s67, 0
      %s70 = sadd.s32 %s69, 1
      %s71 = scalar_select %p68, %s69, %s70
      %p74 = pneg %p68
      %p75 = scmp.eq.s32.totalorder %s17, 1
      %p76 = por %p74, %p75
      %p77 = scmp.ne.s32.totalorder %s69, %s72
      %p78 = scmp.eq.s32.totalorder %s17, 0
      %p79 = por %p77, %p78
      %p80 = scmp.ne.s32.totalorder %s69, %s72
      %p81 = scmp.eq.s32.totalorder %s22, 1
      %p82 = por %p80, %p81
      %p83 = scmp.ne.s32.totalorder %s72, %s73
      %p84 = scmp.eq.s32.totalorder %s22, 0
      %p85 = por %p83, %p84
      %p86 = scmp.ne.s32.totalorder %s72, %s73
      %p87 = scmp.eq.s32.totalorder %s23, 1
      %p88 = por %p86, %p87
      %p90 = scmp.ne.s32.totalorder %s73, %s89
      %p91 = scmp.eq.s32.totalorder %s23, 0
      %p92 = por %p90, %p91
      %s93 = ssub.s32 %s24, %s36
      %s94 = ssub.s32 %s25, %s32
      %s95 = sor.u32 %s93, %s94
      %p96 = scmp.eq.s32.totalorder %s95, 0
      %s98 = sadd.s32 %s97, 1
      %s99 = scalar_select %p96, %s97, %s98
      %p102 = pneg %p96
      %p103 = scmp.eq.s32.totalorder %s17, 1
      %p104 = por %p102, %p103
      %p105 = scmp.ne.s32.totalorder %s97, %s100
      %p106 = scmp.eq.s32.totalorder %s17, 0
      %p107 = por %p105, %p106
      %p108 = scmp.ne.s32.totalorder %s97, %s100
      %p109 = scmp.eq.s32.totalorder %s22, 1
      %p110 = por %p108, %p109
      %p111 = scmp.ne.s32.totalorder %s100, %s101
      %p112 = scmp.eq.s32.totalorder %s22, 0
      %p113 = por %p111, %p112
      %p114 = scmp.ne.s32.totalorder %s100, %s101
      %p115 = scmp.eq.s32.totalorder %s23, 1
      %p116 = por %p114, %p115
      %p118 = scmp.ne.s32.totalorder %s101, %s117
      %p119 = scmp.eq.s32.totalorder %s23, 0
      %p120 = por %p118, %p119
      %p121 = scmp.le.s32.totalorder 1, %s17
      %p122 = scmp.lt.s32.totalorder %s17, 3
      %p123 = pnand %p121, %p122
      %p124 = pneg %p123
      // Predicated region
      $region9: #{tpu_custom_call.1} parent=5 // pred_check
        _
      $region10: #{tpu_custom_call.1} parent=5 // pred_check_branch
        %126 = sbr.rel (%p123) target = $region12
      $region11: #{tpu_custom_call.1} parent=5 // pred_region
        %s127 = ssub.s32 %s17, 1
      $region12: #{tpu_custom_call.1} parent=5 // pred_fallthru
        _
      %p128 = scmp.lt.s32.totalorder %s17, 2
      // Predicated region
      $region13: #{tpu_custom_call.1} parent=5 // pred_check
        %p129 = pneg %p128
      $region14: #{tpu_custom_call.1} parent=5 // pred_check_branch
        %131 = sbr.rel (%p129) target = $region16
      $region15: #{tpu_custom_call.1} parent=5 // pred_region
        // Predicated region
        $region17: #{tpu_custom_call.1} parent=15 // pred_check
          %p132 = pneg %p51
        $region18: #{tpu_custom_call.1} parent=15 // pred_check_branch
          %134 = sbr.rel (%p132) target = $region20
        $region19: #{tpu_custom_call.1} parent=15 // pred_region
          %s135 = sand.u32 %s41, 1
          %s136 = scalar_lea.sflag [#allocation3], %s135
          %s137 = sand.u32 %s41, 1
          %s138 = smul.addr %s137, 8
          %s139 = scalar_lea.vmem [#allocation2], %s138
          %141 = vsyncadd %s136, 0
          %s142 = smul.addr %s24, 4
          %s143 = sadd.s32 %s25, %s142
          %s144 = smul.addr %s143, 2
          %s145 = scalar_lea.hbm %s0, %s144
          %s146 = sshll.u32 %s145, 4
          %s147 = int_to_ptr.hbm [resolvable:$true] %s146
          %s148 = sshll.u32 %s139, 4
          %s149 = int_to_ptr.vmem [resolvable:$true] %s148
          %154 = dma.hbm_to_vmem [thread:$0]  %s147, 128, %s149, %s136, 32, 32, 2
        $region20: #{tpu_custom_call.1} parent=15 // pred_fallthru
          _
        // Predicated region
        $region21: #{tpu_custom_call.1} parent=15 // pred_check
          %p155 = pneg %p79
        $region22: #{tpu_custom_call.1} parent=15 // pred_check_branch
          %157 = sbr.rel (%p155) target = $region24
        $region23: #{tpu_custom_call.1} parent=15 // pred_region
          %s158 = sand.u32 %s69, 1
          %s159 = scalar_lea.sflag [#allocation6], %s158
          %s160 = sand.u32 %s69, 1
          %s161 = smul.addr %s160, 8
          %s162 = scalar_lea.vmem [#allocation5], %s161
          %164 = vsyncadd %s159, 0
          %s165 = smul.addr %s24, 4
          %s166 = sadd.s32 %s25, %s165
          %s167 = smul.addr %s166, 2
          %s168 = scalar_lea.hbm %s1, %s167
          %s169 = sshll.u32 %s168, 4
          %s170 = int_to_ptr.hbm [resolvable:$true] %s169
          %s171 = sshll.u32 %s162, 4
          %s172 = int_to_ptr.vmem [resolvable:$true] %s171
          %177 = dma.hbm_to_vmem [thread:$0]  %s170, 128, %s172, %s159, 32, 32, 2
        $region24: #{tpu_custom_call.1} parent=15 // pred_fallthru
          _
      $region16: #{tpu_custom_call.1} parent=5 // pred_fallthru
        _
      %p178 = scmp.le.s32.totalorder 1, %s17
      %p179 = scmp.lt.s32.totalorder %s17, 3
      %p180 = pnand %p178, %p179
      %p181 = pneg %p180
      // Predicated region
      $region25: #{tpu_custom_call.1} parent=5 // pred_check
        _
      $region26: #{tpu_custom_call.1} parent=5 // pred_check_branch
        %183 = sbr.rel (%p180) target = $region28
      $region27: #{tpu_custom_call.1} parent=5 // pred_region
        %s184 = ssub.s32 %s17, 1
        %s185 = sand.u32 %s44, 1
        %s186 = scalar_lea.sflag [#allocation3], %s185
        %s187 = sand.u32 %s44, 1
        %s188 = smul.addr %s187, 8
        %s189 = scalar_lea.vmem [#allocation2], %s188
        // Predicated region
        $region29: #{tpu_custom_call.1} parent=27 // pred_check
          %p190 = pneg %p57
        $region30: #{tpu_custom_call.1} parent=27 // pred_check_branch
          %192 = sbr.rel (%p190) target = $region32
        $region31: #{tpu_custom_call.1} parent=27 // pred_region
          %194 = dma.done %s186, 128
        $region32: #{tpu_custom_call.1} parent=27 // pred_fallthru
          _
        %s195 = sand.u32 %s72, 1
        %s196 = scalar_lea.sflag [#allocation6], %s195
        %s197 = sand.u32 %s72, 1
        %s198 = smul.addr %s197, 8
        %s199 = scalar_lea.vmem [#allocation5], %s198
        // Predicated region
        $region33: #{tpu_custom_call.1} parent=27 // pred_check
          %p200 = pneg %p85
        $region34: #{tpu_custom_call.1} parent=27 // pred_check_branch
          %202 = sbr.rel (%p200) target = $region36
        $region35: #{tpu_custom_call.1} parent=27 // pred_region
          %204 = dma.done %s196, 128
        $region36: #{tpu_custom_call.1} parent=27 // pred_fallthru
          _
        %s205 = sand.u32 %s44, 1
        %s206 = scalar_lea.sflag [#allocation3], %s205
        %s207 = sand.u32 %s44, 1
        %s208 = smul.addr %s207, 8
        %s209 = scalar_lea.vmem [#allocation2], %s208
        %p210 = pneg %p57
        %p211 = pneg %p54
        %s212 = sand.u32 %s72, 1
        %s213 = scalar_lea.sflag [#allocation6], %s212
        %s214 = sand.u32 %s72, 1
        %s215 = smul.addr %s214, 8
        %s216 = scalar_lea.vmem [#allocation5], %s215
        %p217 = pneg %p85
        %p218 = pneg %p82
        %p219 = pneg %p113
        %p220 = pneg %p110
        %s221 = sand.u32 %s100, 1
        %s222 = scalar_lea.sflag [#allocation4], %s221
        %s223 = sand.u32 %s100, 1
        %s224 = smul.addr %s223, 2
        %s225 = scalar_lea.vmem [#allocation7], %s224
        %v226 = vld [vmem:[%s189] sm:$0x3]
        %v227 = vld [vmem:[%s189 + $0x2] sm:$0x3]
        %v228 = vld [vmem:[%s189 + $0x4] sm:$0x3]
        %v229 = vld [vmem:[%s189 + $0x6] sm:$0x3]
        %v230 = vld [vmem:[%s199] sm:$0x3]
        %v231 = vld [vmem:[%s199 + $0x2] sm:$0x3]
        %v232 = vld [vmem:[%s199 + $0x4] sm:$0x3]
        %v233 = vld [vmem:[%s199 + $0x6] sm:$0x3]
        %v234 = vmul.f32 %v226, %v230
        %v235 = vmul.f32 %v227, %v231
        %v236 = vmul.f32 %v228, %v232
        %v237 = vmul.f32 %v229, %v233
        %vm238 = vcmask 1041408
        %v239 = vsel %vm238, %v234, 0.0
        %v240 = vsel %vm238, %v235, 0.0
        %v241 = vadd.f32 %v239, %v240
        %v242 = vsel %vm238, %v236, 0.0
        %v243 = vadd.f32 %v241, %v242
        %v244 = vsel %vm238, %v237, 0.0
        %v245 = vadd.f32 %v243, %v244
        %v246 = vmul.f32 %v226, %v226
        %v247 = vmul.f32 %v227, %v227
        %v248 = vmul.f32 %v228, %v228
        %v249 = vmul.f32 %v229, %v229
        %v250 = vsel %vm238, %v246, 0.0
        %v251 = vsel %vm238, %v247, 0.0
        %v252 = vadd.f32 %v250, %v251
        %v253 = vsel %vm238, %v248, 0.0
        %v254 = vadd.f32 %v252, %v253
        %v255 = vsel %vm238, %v249, 0.0
        %v256 = vadd.f32 %v254, %v255
        %v257 = vrsqrt.pop %v256
        %v258 = vmul.f32 %v257, %v256
        %v259 = vmul.f32 %v258, %v257
        %v260 = vmul.f32 0.5, %v259
        %v261 = vsub.f32 1.5, %v260
        %v262 = vmul.f32 %v257, %v261
        %v263 = vmul.f32 %v256, %v262
        %vm264 = vcmp.eq.f32.partialorder %v256, inf
        %v265 = vsel %vm264, %v256, %v263
        %vm266 = vcmp.eq.f32.partialorder %v256, 0.0
        %v267 = vand.u32 %v256, 2147483648
        %v268 = vsel %vm266, %v267, %v265
        %v269 = vmul.f32 %v230, %v230
        %v270 = vmul.f32 %v231, %v231
        %v271 = vmul.f32 %v232, %v232
        %v272 = vmul.f32 %v233, %v233
        %v273 = vsel %vm238, %v269, 0.0
        %v274 = vsel %vm238, %v270, 0.0
        %v275 = vadd.f32 %v273, %v274
        %v276 = vsel %vm238, %v271, 0.0
        %v277 = vadd.f32 %v275, %v276
        %v278 = vsel %vm238, %v272, 0.0
        %v279 = vadd.f32 %v277, %v278
        %v280 = vrsqrt.pop %v279
        %v281 = vmul.f32 %v280, %v279
        %v282 = vmul.f32 %v281, %v280
        %v283 = vmul.f32 0.5, %v282
        %v284 = vsub.f32 1.5, %v283
        %v285 = vmul.f32 %v280, %v284
        %v286 = vmul.f32 %v279, %v285
        %vm287 = vcmp.eq.f32.partialorder %v279, inf
        %v288 = vsel %vm287, %v279, %v286
        %vm289 = vcmp.eq.f32.partialorder %v279, 0.0
        %v290 = vand.u32 %v279, 2147483648
        %v291 = vsel %vm289, %v290, %v288
        %v292 = vmul.f32 %v268, %v291
        %v293 = vmax.f32 %v292, 1e-08
        %v294 = vrcp.pop %v293
        %v295 = vmul.f32 %v293, %v294
        %v296 = vsub.f32 1.0, %v295
        %v297 = vmul.f32 %v294, %v296
        %v298 = vadd.f32 %v294, %v297
        %vm299 = vweird.f32 %v293
        %vm300 = vweird.f32 %v294
        %vm301 = vmor %vm299, %vm300
        %v302 = vsel %vm301, %v294, %v298
        %v303 = vand.u32 2147483647, %v293
        %vm304 = vcmp.eq.f32.partialorder %v303, 8.507059e+37
        %v305 = vand.u32 %v293, 2147483648
        %v306 = vor.u32 1.1754944e-38, %v305
        %v307 = vsel %vm304, %v306, %v302
        %v308 = vmul.f32 %v245, %v307
        %309 = vst [vmem:[%s225] sm:$0x3] %v308
        %s310 = sand.u32 %s100, 1
        %s311 = scalar_lea.sflag [#allocation4], %s310
        %s312 = sand.u32 %s100, 1
        %s313 = smul.addr %s312, 2
        %s314 = scalar_lea.vmem [#allocation7], %s313
        // Predicated region
        $region37: #{tpu_custom_call.1} parent=27 // pred_check
          %p315 = pneg %p110
        $region38: #{tpu_custom_call.1} parent=27 // pred_check_branch
          %317 = sbr.rel (%p315) target = $region40
        $region39: #{tpu_custom_call.1} parent=27 // pred_region
          %319 = vsyncadd %s311, 0
          %s320 = sadd.s32 %s27, %s26
          %s321 = smul.addr %s320, 2
          %s322 = scalar_lea.hbm %s2, %s321
          %s324 = sshll.u32 %s314, 4
          %s325 = int_to_ptr.vmem [resolvable:$true] %s324
          %s326 = sshll.u32 %s322, 4
          %s327 = int_to_ptr.hbm [resolvable:$true] %s326
          %329 = dma.vmem_to_hbm [thread:$0]  %s325, 32, %s327, %s311
        $region40: #{tpu_custom_call.1} parent=27 // pred_fallthru
          _
      $region28: #{tpu_custom_call.1} parent=5 // pred_fallthru
        _
      %p330 = scmp.le.s32.totalorder 2, %s17
      // Predicated region
      $region41: #{tpu_custom_call.1} parent=5 // pred_check
        %p331 = pneg %p330
      $region42: #{tpu_custom_call.1} parent=5 // pred_check_branch
        %333 = sbr.rel (%p331) target = $region44
      $region43: #{tpu_custom_call.1} parent=5 // pred_region
        %s334 = ssub.s32 %s17, 2
        // Predicated region
        $region45: #{tpu_custom_call.1} parent=43 // pred_check
          %p335 = pneg %p116
        $region46: #{tpu_custom_call.1} parent=43 // pred_check_branch
          %337 = sbr.rel (%p335) target = $region48
        $region47: #{tpu_custom_call.1} parent=43 // pred_region
          %s338 = sand.u32 %s101, 1
          %s339 = scalar_lea.sflag [#allocation4], %s338
          %s340 = sand.u32 %s101, 1
          %s341 = smul.addr %s340, 2
          %s342 = scalar_lea.vmem [#allocation7], %s341
          %344 = dma.done %s339, 32
        $region48: #{tpu_custom_call.1} parent=43 // pred_fallthru
          _
      $region44: #{tpu_custom_call.1} parent=5 // pred_fallthru
        _
    $region6: #{tpu_custom_call.1} parent=1 // loop_footer
      %s21 = sadd.s32 1, %s17
    $region7: #{tpu_custom_call.1} parent=1 // loop_footer_branch
      %16 = sbr.rel target = $region3
    $region8: #{tpu_custom_call.1} parent=1 // loop_exit
      _
    %345 = vsyncpa [#allocation3], 1
    %s346 = scalar_lea.sflag [#allocation3], 1
    %347 = vsyncpa %s346, 1
    %348 = vsyncpa [#allocation6], 1
    %s349 = scalar_lea.sflag [#allocation6], 1
    %350 = vsyncpa %s349, 1
    %351 = vsyncpa [#allocation4], 1
    %s352 = scalar_lea.sflag [#allocation4], 1
    %353 = vsyncpa %s352, 1

</llo_original>
